<compile_context>
chip_gen: v7x
topology: tpu7x:2x2x1
jax: 0.10.0
libtpu: 0.0.40
codegen_flags: <defaults>
</compile_context>

<pallas_src>
import math
from functools import partial

import jax
import jax.numpy as jnp
from jax.experimental import pallas as pl
from jax.experimental.pallas import tpu as pltpu


def _round_up(x, m):
    return ((x + m - 1) // m) * m


# ---------------------------------------------------------------------------
# Kernel: one matmul + bias adds + aligned slice stores
# ---------------------------------------------------------------------------
def symmetric_kernel(x_ref, w_ref, sbias_ref, cbias_ref, out_ref, *, Sp, Cp, Np):
    f32 = jnp.float32
    out_dt = out_ref.dtype

    # Single fused matmul, f32 accumulation on the MXU.
    #   y[:, :Cp]            = c@c2c^T + ((l+r)/2)@s2c^T              (out_c pre-bias)
    #   y[:, Cp:Cp+Np]       = n@n2n^T + (l-r)@s2n^T                  (out_n)
    #   y[:, Cp+Np:+Sp]      = c@c2s^T + 0.5*(l+r)@(s1s+s2s)^T        (sa pre-bias)
    #   y[:, Cp+Np+Sp:]      = n@n2s^T + 0.5*(l-r)@(s1s-s2s)^T        (sb)
    y = jnp.dot(x_ref[...], w_ref[...], preferred_element_type=f32)

    # out_c / out_n: direct lane-aligned stores (all offsets are 128-multiples).
    out_ref[:, 0:Cp] = (y[:, 0:Cp] + cbias_ref[...].astype(f32)).astype(out_dt)
    out_ref[:, Cp:Cp + Np] = y[:, Cp:Cp + Np].astype(out_dt)

    # out_l = sa + sb ; out_r = sa - sb
    sa = y[:, Cp + Np:Cp + Np + Sp] + sbias_ref[...].astype(f32)
    sb = y[:, Cp + Np + Sp:Cp + Np + 2 * Sp]
    out_ref[:, Cp + Np:Cp + Np + Sp] = (sa + sb).astype(out_dt)
    out_ref[:, Cp + Np + Sp:Cp + Np + 2 * Sp] = (sa - sb).astype(out_dt)


# ---------------------------------------------------------------------------
# One-time weight packing (hoisted out of the hot path)
# ---------------------------------------------------------------------------
def pack_params(params, dtype=jnp.float32):
    """Fuse all 8 PyTorch-convention weights (and the ± side combine) into one
    [Kc+Kn+2*Ks, Cp+Np+2*Sp] matrix; zero-pad each output region to 128 lanes."""
    f32 = jnp.float32
    g = lambda k: params[k].astype(f32)
    c2s, s1s, s2s, n2s = g("c2s"), g("s1s"), g("s2s"), g("n2s")
    s2c, c2c, n2n, s2n = g("s2c"), g("c2c"), g("n2n"), g("s2n")

    S, C, N = c2s.shape[0], c2c.shape[0], n2n.shape[0]
    Kc, Kn, Ks = c2c.shape[1], n2n.shape[1], s1s.shape[1]
    Sp, Cp, Np = _round_up(S, 128), _round_up(C, 128), _round_up(N, 128)

    def padw(w_t, width):  # [K, n] -> [K, width] zero-padded lanes
        return jnp.pad(w_t, ((0, 0), (0, width - w_t.shape[1])))

    z = lambda K, width: jnp.zeros((K, width), f32)
    sp_t = (0.5 * (s1s + s2s)).T          # [Ks, S]
    sm_t = (0.5 * (s1s - s2s)).T          # [Ks, S]

    # Column layout: [ Cp (out_c) | Np (out_n) | Sp (sa) | Sp (sb) ]
    row_c = jnp.concatenate([padw(c2c.T, Cp), z(Kc, Np),
                             padw(c2s.T, Sp), z(Kc, Sp)], axis=1)
    row_n = jnp.concatenate([z(Kn, Cp), padw(n2n.T, Np),
                             z(Kn, Sp), padw(n2s.T, Sp)], axis=1)
    row_l = jnp.concatenate([padw(0.5 * s2c.T, Cp), padw(s2n.T, Np),
                             padw(sp_t, Sp), padw(sm_t, Sp)], axis=1)
    row_r = jnp.concatenate([padw(0.5 * s2c.T, Cp), padw(-s2n.T, Np),
                             padw(sp_t, Sp), padw(-sm_t, Sp)], axis=1)
    w = jnp.concatenate([row_c, row_n, row_l, row_r], axis=0).astype(dtype)

    sbias = jnp.zeros((1, Sp), f32).at[0, :S].set(params["sbias"].astype(f32))
    cbias = jnp.zeros((1, Cp), f32).at[0, :C].set(params["cbias"].astype(f32))
    return {"w": w, "sbias": sbias, "cbias": cbias}


# ---------------------------------------------------------------------------
# Planning helpers (static, run in plain Python)
# ---------------------------------------------------------------------------
def _vmem_ceiling():
    """Generation-aware VMEM ceiling: ~100 MiB on 128 MiB parts (v5e/v6e),
    ~46 MiB on 64 MiB-per-TC parts (v7x)."""
    try:
        info = pltpu.get_tpu_info()
        cap = int(getattr(info, "vmem_capacity_bytes", 0)) or (64 << 20)
    except Exception:
        cap = 64 << 20   # conservative fallback
    return max(24 << 20, min(cap - (18 << 20), int(0.8 * cap)))


def _plan(B, Ktot, Wtot, x_itemsize, out_itemsize, w_bytes, block_b, single_buffer):
    # Sublane multiple by dtype: 8 f32, 16 bf16, 32 int8.
    sub = 8 * max(1, 4 // x_itemsize)
    ceiling = _vmem_ceiling()
    in_row = _round_up(Ktot, 128) * x_itemsize   # input tile rows are lane-padded in VMEM
    out_row = Wtot * out_itemsize
    w_resident = (1 if single_buffer else 2) * w_bytes

    # Largest batch tile that fits the budget (activations double-buffered).
    budget = max(ceiling - w_resident - (4 << 20), 2 * sub * (in_row + out_row))
    bb_vmem = max(sub, (budget // (2 * (in_row + out_row))) // sub * sub)
    bb = min(_round_up(block_b, sub), _round_up(B, sub), bb_vmem)
    if B > sub:                                   # keep >=2 grid steps (v7x megacore)
        bb = min(bb, _round_up((B + 1) // 2, sub))
    bb = max(sub, bb)

    need = 2 * bb * (in_row + out_row) + w_resident + (2 << 20)
    vmem_limit = int(min(max(need, 32 << 20), max(ceiling, need)))
    return bb, vmem_limit


# ---------------------------------------------------------------------------
# Forward implementation (jitted) + public wrapper
# ---------------------------------------------------------------------------
@partial(jax.jit, static_argnames=("bb", "dims", "padded", "out_dtype",
                                   "vmem_limit", "single_buffer_weights"))
def _forward_impl(c, n, l, r, w, sbias, cbias, *, bb, dims, padded, out_dtype,
                  vmem_limit, single_buffer_weights):
    S, C, N = dims
    Sp, Cp, Np = padded
    B = c.shape[0]
    Ktot = c.shape[1] + n.shape[1] + l.shape[1] + r.shape[1]
    W_out = Cp + Np + 2 * Sp

    # Single concatenated activation slab -> one DMA / one VMEM buffer per step.
    x = jnp.concatenate([c, n, l, r], axis=1)
    B_pad = _round_up(B, bb)
    if B_pad != B:
        x = jnp.pad(x, ((0, B_pad - B), (0, 0)))
    grid = (B_pad // bb,)

    if single_buffer_weights:
        # Grid-invariant operands: DMA'd once, single VMEM copy.
        def resident(shape):
            return pl.BlockSpec(shape, lambda i: (0, 0), pipeline_mode=pl.Buffered(1))
    else:
        def resident(shape):
            return pl.BlockSpec(shape, lambda i: (0, 0))

    kern = partial(symmetric_kernel, Sp=Sp, Cp=Cp, Np=Np)
    out = pl.pallas_call(
        kern,
        out_shape=jax.ShapeDtypeStruct((B_pad, W_out), out_dtype),
        grid=grid,
        in_specs=[
            pl.BlockSpec((bb, Ktot), lambda i: (i, 0)),
            resident(w.shape),
            resident(sbias.shape),
            resident(cbias.shape),
        ],
        out_specs=pl.BlockSpec((bb, W_out), lambda i: (i, 0)),
        compiler_params=pltpu.CompilerParams(
            dimension_semantics=("parallel",),
            vmem_limit_bytes=vmem_limit),
    )(x, w, sbias, cbias)

    out_c = out[:B, 0:C]
    out_n = out[:B, Cp:Cp + N]
    out_l = out[:B, Cp + Np:Cp + Np + S]
    out_r = out[:B, Cp + Np + Sp:Cp + Np + Sp + S]
    return out_c, out_n, out_l, out_r


_SINGLE_BUFFER_OK = True   # flipped to False if the installed JAX rejects Buffered(1)


def symmetric_forward(c, n, l, r, packed, *, dims, block_b=512, out_dtype=None):
    """dims = (out_side, out_const, out_neg). Returns (out_c, out_n, out_l, out_r)."""
    global _SINGLE_BUFFER_OK
    S, C, N = dims
    # TODO(synk): in_side == 0 branch (side terms identically zero, cbias dropped) is not kernelized.
    assert l.shape[1] > 0, "this kernel implements the in_side > 0 path"

    w, sbias, cbias = packed["w"], packed["sbias"], packed["cbias"]
    Sp, Cp = sbias.shape[1], cbias.shape[1]
    Np = w.shape[1] - Cp - 2 * Sp
    B = c.shape[0]
    Kc, Kn, Ks = c.shape[1], n.shape[1], l.shape[1]
    assert w.shape[0] == Kc + Kn + 2 * Ks, "packed weight does not match input widths"

    out_dt = jnp.dtype(c.dtype if out_dtype is None else out_dtype)
    x_itemsize = jnp.dtype(c.dtype).itemsize
    w_bytes = sum(int(a.size) * jnp.dtype(a.dtype).itemsize for a in (w, sbias, cbias))

    def run(single_buffer):
        bb, vmem_limit = _plan(B, Kc + Kn + 2 * Ks, Cp + Np + 2 * Sp, x_itemsize,
                               out_dt.itemsize, w_bytes, block_b, single_buffer)
        return _forward_impl(c, n, l, r, w, sbias, cbias,
                             bb=bb, dims=(S, C, N), padded=(Sp, Cp, Np),
                             out_dtype=out_dt, vmem_limit=vmem_limit,
                             single_buffer_weights=single_buffer)

    if _SINGLE_BUFFER_OK:
        try:
            return run(True)
        except Exception:
            _SINGLE_BUFFER_OK = False   # this JAX build rejects Buffered(1); use default
    return run(False)


# ---------------------------------------------------------------------------
# Parameter init (matches PyTorch reset_parameters) and pure-JAX reference
# ---------------------------------------------------------------------------
def init_params(key, in_const, in_neg, in_side, out_const, out_neg, out_side, wmag=1.0):
    shapes = {
        "c2s": (out_side, in_const),
        "s1s": (out_side, in_side),
        "s2s": (out_side, in_side),
        "n2s": (out_side, in_neg),
        "s2c": (out_const, in_side),
        "c2c": (out_const, in_const),
        "n2n": (out_neg, in_neg),
        "s2n": (out_neg, in_side),
    }
    params = {}
    keys = jax.random.split(key, len(shapes))
    for k, (name, (fan_out, fan_in)) in zip(keys, shapes.items()):
        bound = wmag * math.sqrt(6.0 / (fan_in + fan_out))
        params[name] = jax.random.uniform(k, (fan_out, fan_in), jnp.float32,
                                          minval=-bound, maxval=bound)
    params["sbias"] = jnp.zeros((out_side,), jnp.float32)
    params["cbias"] = jnp.zeros((out_const,), jnp.float32)
    return params


def reference_forward(c, n, l, r, p):
    """Plain-JAX replica of the PyTorch forward (F.linear(x, W, b) = x @ W.T + b)."""
    lin = lambda x, w, b=None: x @ w.T + (0.0 if b is None else b)
    c2s = lin(c, p["c2s"], p["sbias"])
    n2s = lin(n, p["n2s"])
    s2c = lin((l + r) / 2, p["s2c"], p["cbias"])
    s2n = lin(l - r, p["s2n"])
    s2l = lin(l, p["s1s"]) + lin(r, p["s2s"])
    s2r = lin(r, p["s1s"]) + lin(l, p["s2s"])
    return (s2c + lin(c, p["c2c"]), s2n + lin(n, p["n2n"]),
            c2s + n2s + s2l, c2s - n2s + s2r)


if __name__ == "__main__":
    B = 40
    in_const, in_neg, in_side = 4, 4, 8
    out_const, out_neg, out_side = 4, 4, 8

    key = jax.random.PRNGKey(0)
    kc, kn, kl, kr, kp = jax.random.split(key, 5)
    c = jax.random.normal(kc, (B, in_const), jnp.float32)
    n = jax.random.normal(kn, (B, in_neg), jnp.float32)
    l = jax.random.normal(kl, (B, in_side), jnp.float32)
    r = jax.random.normal(kr, (B, in_side), jnp.float32)

    params = init_params(kp, in_const, in_neg, in_side, out_const, out_neg, out_side)
    refs = reference_forward(c, n, l, r, params)
    dims = (out_side, out_const, out_neg)

    # f32 path, default (large) block_b: B=40 -> bb=24, padded to 48, grid of 2.
    packed_f32 = pack_params(params, dtype=jnp.float32)
    outs = symmetric_forward(c, n, l, r, packed_f32, dims=dims)
    outs = jax.block_until_ready(outs)
    for o, ref in zip(outs, refs):
        assert o.shape == ref.shape and o.dtype == ref.dtype
        assert jnp.allclose(o, ref, atol=5e-5, rtol=5e-5), "mismatch vs reference (f32)"

    # bf16 storage / f32 accumulation / bf16 output path. block_b=16 -> grid of 3.
    packed_bf16 = pack_params(params, dtype=jnp.bfloat16)
    bf = lambda x: x.astype(jnp.bfloat16)
    outs_bf = symmetric_forward(bf(c), bf(n), bf(l), bf(r), packed_bf16,
                                dims=dims, block_b=16)
    outs_bf = jax.block_until_ready(outs_bf)
    for o, ref in zip(outs_bf, refs):
        assert o.shape == ref.shape
        assert o.dtype == jnp.bfloat16
        of = o.astype(jnp.float32)
        assert bool(jnp.all(jnp.isfinite(of)))
        assert jnp.allclose(of, ref, atol=2e-1, rtol=2e-1), "mismatch vs reference (bf16)"

    print("KERNEL_OK")
</pallas_src>

<mosaic_0001>
module attributes {stable_mosaic.version = 11 : i64} {
  func.func @symmetric_kernel(%arg0: i32, %arg1: memref<24x24xf32, #tpu.memory_space<vmem>>, %arg2: memref<24x512xf32, #tpu.memory_space<vmem>>, %arg3: memref<1x128xf32, #tpu.memory_space<vmem>>, %arg4: memref<1x128xf32, #tpu.memory_space<vmem>>, %arg5: memref<24x512xf32, #tpu.memory_space<vmem>>) attributes {dimension_semantics = [#tpu.dimension_semantics<parallel>], iteration_bounds = array<i64: 2>, scalar_prefetch = 0 : i64, scratch_operands = 0 : i64, tpu.core_type = #tpu.core_type<tc>, window_params = [{transform_indices = @transform_0, window_bounds = array<i64: 24, 24>}, {pipeline_mode = #tpu.pipeline_mode<synchronous>, transform_indices = @transform_1, window_bounds = array<i64: 24, 512>}, {pipeline_mode = #tpu.pipeline_mode<synchronous>, transform_indices = @transform_2, window_bounds = array<i64: 1, 128>}, {pipeline_mode = #tpu.pipeline_mode<synchronous>, transform_indices = @transform_3, window_bounds = array<i64: 1, 128>}, {transform_indices = @transform_4, window_bounds = array<i64: 24, 512>}]} {
    %c0 = arith.constant 0 : index
    %c0_0 = arith.constant 0 : index
    %0 = vector.load %arg1[%c0, %c0_0] : memref<24x24xf32, #tpu.memory_space<vmem>>, vector<24x24xf32>
    %c0_1 = arith.constant 0 : index
    %c0_2 = arith.constant 0 : index
    %1 = vector.load %arg2[%c0_1, %c0_2] : memref<24x512xf32, #tpu.memory_space<vmem>>, vector<24x512xf32>
    %cst = arith.constant dense<0.000000e+00> : vector<24x512xf32>
    %2 = tpu.matmul %0, %1, %cst {dimension_numbers = #tpu.dot_dimension_numbers<[1], [0], [0], [1], [0, 0, 1, 1], [], []>} : vector<24x24xf32>, vector<24x512xf32>, vector<24x512xf32> -> vector<24x512xf32>
    %3 = vector.extract_strided_slice %2 {offsets = [0, 0], sizes = [24, 128], strides = [1, 1]} : vector<24x512xf32> to vector<24x128xf32>
    %c0_3 = arith.constant 0 : index
    %c0_4 = arith.constant 0 : index
    %4 = vector.load %arg4[%c0_3, %c0_4] : memref<1x128xf32, #tpu.memory_space<vmem>>, vector<1x128xf32>
    %5 = vector.broadcast %4 : vector<1x128xf32> to vector<24x128xf32>
    %6 = arith.addf %3, %5 : vector<24x128xf32>
    %c0_5 = arith.constant 0 : index
    %c0_6 = arith.constant 0 : index
    %7 = vector.load %arg5[%c0_5, %c0_6] : memref<24x512xf32, #tpu.memory_space<vmem>>, vector<24x128xf32>
    tpu.vector_store %arg5[%c0_5, %c0_6], %6 {strides = array<i32>} : memref<24x512xf32, #tpu.memory_space<vmem>>, vector<24x128xf32>,
    %8 = vector.extract_strided_slice %2 {offsets = [0, 128], sizes = [24, 128], strides = [1, 1]} : vector<24x512xf32> to vector<24x128xf32>
    %c0_7 = arith.constant 0 : index
    %c128 = arith.constant 128 : index
    %9 = vector.load %arg5[%c0_7, %c128] : memref<24x512xf32, #tpu.memory_space<vmem>>, vector<24x128xf32>
    tpu.vector_store %arg5[%c0_7, %c128], %8 {strides = array<i32>} : memref<24x512xf32, #tpu.memory_space<vmem>>, vector<24x128xf32>,
    %10 = vector.extract_strided_slice %2 {offsets = [0, 256], sizes = [24, 128], strides = [1, 1]} : vector<24x512xf32> to vector<24x128xf32>
    %c0_8 = arith.constant 0 : index
    %c0_9 = arith.constant 0 : index
    %11 = vector.load %arg3[%c0_8, %c0_9] : memref<1x128xf32, #tpu.memory_space<vmem>>, vector<1x128xf32>
    %12 = vector.broadcast %11 : vector<1x128xf32> to vector<24x128xf32>
    %13 = arith.addf %10, %12 : vector<24x128xf32>
    %14 = vector.extract_strided_slice %2 {offsets = [0, 384], sizes = [24, 128], strides = [1, 1]} : vector<24x512xf32> to vector<24x128xf32>
    %15 = arith.addf %13, %14 : vector<24x128xf32>
    %c0_10 = arith.constant 0 : index
    %c256 = arith.constant 256 : index
    %16 = vector.load %arg5[%c0_10, %c256] : memref<24x512xf32, #tpu.memory_space<vmem>>, vector<24x128xf32>
    tpu.vector_store %arg5[%c0_10, %c256], %15 {strides = array<i32>} : memref<24x512xf32, #tpu.memory_space<vmem>>, vector<24x128xf32>,
    %17 = arith.subf %13, %14 : vector<24x128xf32>
    %c0_11 = arith.constant 0 : index
    %c384 = arith.constant 384 : index
    %18 = vector.load %arg5[%c0_11, %c384] : memref<24x512xf32, #tpu.memory_space<vmem>>, vector<24x128xf32>
    tpu.vector_store %arg5[%c0_11, %c384], %17 {strides = array<i32>} : memref<24x512xf32, #tpu.memory_space<vmem>>, vector<24x128xf32>,
    return
  }
  func.func @transform_0(%arg0: i32) -> (i32, i32) {
    %c0_i32 = arith.constant 0 : i32
    %c0_i32_0 = arith.constant 0 : i32
    return %arg0, %c0_i32 : i32, i32
  }
  func.func @transform_1(%arg0: i32) -> (i32, i32) {
    %c0_i32 = arith.constant 0 : i32
    %c0_i32_0 = arith.constant 0 : i32
    %c0_i32_1 = arith.constant 0 : i32
    return %c0_i32, %c0_i32_0 : i32, i32
  }
  func.func @transform_2(%arg0: i32) -> (i32, i32) {
    %c0_i32 = arith.constant 0 : i32
    %c0_i32_0 = arith.constant 0 : i32
    %c0_i32_1 = arith.constant 0 : i32
    return %c0_i32, %c0_i32_0 : i32, i32
  }
  func.func @transform_3(%arg0: i32) -> (i32, i32) {
    %c0_i32 = arith.constant 0 : i32
    %c0_i32_0 = arith.constant 0 : i32
    %c0_i32_1 = arith.constant 0 : i32
    return %c0_i32, %c0_i32_0 : i32, i32
  }
  func.func @transform_4(%arg0: i32) -> (i32, i32) {
    %c0_i32 = arith.constant 0 : i32
    %c0_i32_0 = arith.constant 0 : i32
    return %arg0, %c0_i32 : i32, i32
  }
}

module attributes {stable_mosaic.version = 11 : i64} {
  func.func @symmetric_kernel(%arg0: i32, %arg1: memref<24x24xf32, #tpu.memory_space<vmem>>, %arg2: memref<24x512xf32, #tpu.memory_space<vmem>>, %arg3: memref<1x128xf32, #tpu.memory_space<vmem>>, %arg4: memref<1x128xf32, #tpu.memory_space<vmem>>, %arg5: memref<24x512xf32, #tpu.memory_space<vmem>>) attributes {dimension_semantics = [#tpu.dimension_semantics<parallel>], iteration_bounds = array<i64: 2>, scalar_prefetch = 0 : i64, scratch_operands = 0 : i64, tpu.core_type = #tpu.core_type<tc>, window_params = [{transform_indices = @transform_0, window_bounds = array<i64: 24, 24>}, {pipeline_mode = #tpu.pipeline_mode<synchronous>, transform_indices = @transform_1, window_bounds = array<i64: 24, 512>}, {pipeline_mode = #tpu.pipeline_mode<synchronous>, transform_indices = @transform_2, window_bounds = array<i64: 1, 128>}, {pipeline_mode = #tpu.pipeline_mode<synchronous>, transform_indices = @transform_3, window_bounds = array<i64: 1, 128>}, {transform_indices = @transform_4, window_bounds = array<i64: 24, 512>}]} {
    %c0 = arith.constant 0 : index
    %c0_0 = arith.constant 0 : index
    %0 = vector.load %arg1[%c0, %c0_0] : memref<24x24xf32, #tpu.memory_space<vmem>>, vector<24x24xf32>
    %c0_1 = arith.constant 0 : index
    %c0_2 = arith.constant 0 : index
    %1 = vector.load %arg2[%c0_1, %c0_2] : memref<24x512xf32, #tpu.memory_space<vmem>>, vector<24x512xf32>
    %cst = arith.constant dense<0.000000e+00> : vector<24x512xf32>
    %2 = tpu.matmul %0, %1, %cst {dimension_numbers = #tpu.dot_dimension_numbers<[1], [0], [0], [1], [0, 0, 1, 1], [], []>} : vector<24x24xf32>, vector<24x512xf32>, vector<24x512xf32> -> vector<24x512xf32>
    %3 = vector.extract_strided_slice %2 {offsets = [0, 0], sizes = [24, 128], strides = [1, 1]} : vector<24x512xf32> to vector<24x128xf32>
    %c0_3 = arith.constant 0 : index
    %c0_4 = arith.constant 0 : index
    %4 = vector.load %arg4[%c0_3, %c0_4] : memref<1x128xf32, #tpu.memory_space<vmem>>, vector<1x128xf32>
    %5 = vector.broadcast %4 : vector<1x128xf32> to vector<24x128xf32>
    %6 = arith.addf %3, %5 : vector<24x128xf32>
    %c0_5 = arith.constant 0 : index
    %c0_6 = arith.constant 0 : index
    %7 = vector.load %arg5[%c0_5, %c0_6] : memref<24x512xf32, #tpu.memory_space<vmem>>, vector<24x128xf32>
    tpu.vector_store %arg5[%c0_5, %c0_6], %6 {strides = array<i32>} : memref<24x512xf32, #tpu.memory_space<vmem>>, vector<24x128xf32>,
    %8 = vector.extract_strided_slice %2 {offsets = [0, 128], sizes = [24, 128], strides = [1, 1]} : vector<24x512xf32> to vector<24x128xf32>
    %c0_7 = arith.constant 0 : index
    %c128 = arith.constant 128 : index
    %9 = vector.load %arg5[%c0_7, %c128] : memref<24x512xf32, #tpu.memory_space<vmem>>, vector<24x128xf32>
    tpu.vector_store %arg5[%c0_7, %c128], %8 {strides = array<i32>} : memref<24x512xf32, #tpu.memory_space<vmem>>, vector<24x128xf32>,
    %10 = vector.extract_strided_slice %2 {offsets = [0, 256], sizes = [24, 128], strides = [1, 1]} : vector<24x512xf32> to vector<24x128xf32>
    %c0_8 = arith.constant 0 : index
    %c0_9 = arith.constant 0 : index
    %11 = vector.load %arg3[%c0_8, %c0_9] : memref<1x128xf32, #tpu.memory_space<vmem>>, vector<1x128xf32>
    %12 = vector.broadcast %11 : vector<1x128xf32> to vector<24x128xf32>
    %13 = arith.addf %10, %12 : vector<24x128xf32>
    %14 = vector.extract_strided_slice %2 {offsets = [0, 384], sizes = [24, 128], strides = [1, 1]} : vector<24x512xf32> to vector<24x128xf32>
    %15 = arith.addf %13, %14 : vector<24x128xf32>
    %c0_10 = arith.constant 0 : index
    %c256 = arith.constant 256 : index
    %16 = vector.load %arg5[%c0_10, %c256] : memref<24x512xf32, #tpu.memory_space<vmem>>, vector<24x128xf32>
    tpu.vector_store %arg5[%c0_10, %c256], %15 {strides = array<i32>} : memref<24x512xf32, #tpu.memory_space<vmem>>, vector<24x128xf32>,
    %17 = arith.subf %13, %14 : vector<24x128xf32>
    %c0_11 = arith.constant 0 : index
    %c384 = arith.constant 384 : index
    %18 = vector.load %arg5[%c0_11, %c384] : memref<24x512xf32, #tpu.memory_space<vmem>>, vector<24x128xf32>
    tpu.vector_store %arg5[%c0_11, %c384], %17 {strides = array<i32>} : memref<24x512xf32, #tpu.memory_space<vmem>>, vector<24x128xf32>,
    return
  }
  func.func @transform_0(%arg0: i32) -> (i32, i32) {
    %c0_i32 = arith.constant 0 : i32
    %c0_i32_0 = arith.constant 0 : i32
    return %arg0, %c0_i32 : i32, i32
  }
  func.func @transform_1(%arg0: i32) -> (i32, i32) {
    %c0_i32 = arith.constant 0 : i32
    %c0_i32_0 = arith.constant 0 : i32
    %c0_i32_1 = arith.constant 0 : i32
    return %c0_i32, %c0_i32_0 : i32, i32
  }
  func.func @transform_2(%arg0: i32) -> (i32, i32) {
    %c0_i32 = arith.constant 0 : i32
    %c0_i32_0 = arith.constant 0 : i32
    %c0_i32_1 = arith.constant 0 : i32
    return %c0_i32, %c0_i32_0 : i32, i32
  }
  func.func @transform_3(%arg0: i32) -> (i32, i32) {
    %c0_i32 = arith.constant 0 : i32
    %c0_i32_0 = arith.constant 0 : i32
    %c0_i32_1 = arith.constant 0 : i32
    return %c0_i32, %c0_i32_0 : i32, i32
  }
  func.func @transform_4(%arg0: i32) -> (i32, i32) {
    %c0_i32 = arith.constant 0 : i32
    %c0_i32_0 = arith.constant 0 : i32
    return %arg0, %c0_i32 : i32, i32
  }
}

</mosaic_0001>

<llo_original>
// kernel: _forward_impl.1
$region0: #{_forward_impl.1}
  #allocation0 [shape = 'u32[]', space=smem, size = 0x4, offset = 0x4, fixed_abs, tag = 'smem constant byte address 0x4 - core index']
  #allocation1 [shape = 'u32[144,128]{1,0:T(1,128)}', space=vmem, size = 0x12000, scoped, tag = 'internal scratch']
  %s0 = inlined_call_operand.vmem [shape: f32[48,24], index: 0, kind: input, shape index: {}]
  %s1 = inlined_call_operand.vmem [shape: f32[24,512], index: 1, kind: input, shape index: {}]
  %s2 = inlined_call_operand.vmem [shape: f32[1,128], index: 2, kind: input, shape index: {}]
  %s3 = inlined_call_operand.vmem [shape: f32[1,128], index: 3, kind: input, shape index: {}]
  %s4 = inlined_call_operand.vmem [shape: f32[48,512], index: 4, kind: output, shape index: {}]
  %s5 = sld [smem:[#allocation0]]
  $region49: #{_forward_impl.1} parent=0
    _
  %s7 = ssub.s32 1, %s5
  %s8 = scalar_select 0, %s7, %s5
  loop: start=0, step=1, limit=4
  $region2: #{_forward_impl.1} parent=0 // loop_pre_header
    _
  $region3: #{_forward_impl.1} parent=0 // loop_header
    %s10 = sphi 0, %s14
    %p11 = scmp.ge.s32.totalorder %s10, 4
    %s20 = sphi 0, %s22
    %s23 = sphi 0, %s20
    %s24 = sphi 0, %s23
    %s40 = sphi 0, %s24
    %s44 = sphi 0, %s44
    %s46 = sphi 0, %s44
    %s47 = sphi 0, %s46
    %s61 = sphi 0, %s47
    %s65 = sphi 0, %s65
    %s67 = sphi 0, %s65
    %s68 = sphi 0, %s67
    %s82 = sphi 0, %s68
    %s86 = sphi 0, %s86
    %s88 = sphi 0, %s86
    %s89 = sphi 0, %s88
    %s103 = sphi 0, %s89
    %s109 = sphi 0, %s111
    %s112 = sphi 0, %s109
    %s113 = sphi 0, %s112
    %s129 = sphi 0, %s113
  $region4: #{_forward_impl.1} parent=0 // loop_header_branch
    %13 = sbr.rel (%p11) target = $region8
  $region5: #{_forward_impl.1} parent=0 // loop_body
    %s15 = ssub.s32 %s10, 1
    %s16 = ssub.s32 %s10, 2
    %s17 = sadd.s32 %s10, 1
    %s18 = ssub.s32 %s10, %s17
    %p19 = scmp.eq.s32.totalorder %s18, 0
    %s21 = sadd.s32 %s20, 1
    %s22 = scalar_select %p19, %s20, %s21
    %p25 = pneg %p19
    %p26 = scmp.eq.s32.totalorder %s10, 1
    %p27 = por %p25, %p26
    %p28 = scmp.ne.s32.totalorder %s20, %s23
    %p29 = scmp.eq.s32.totalorder %s10, 0
    %p30 = por %p28, %p29
    %p31 = scmp.ne.s32.totalorder %s20, %s23
    %p32 = scmp.eq.s32.totalorder %s15, 1
    %p33 = por %p31, %p32
    %p34 = scmp.ne.s32.totalorder %s23, %s24
    %p35 = scmp.eq.s32.totalorder %s15, 0
    %p36 = por %p34, %p35
    %p37 = scmp.ne.s32.totalorder %s23, %s24
    %p38 = scmp.eq.s32.totalorder %s16, 1
    %p39 = por %p37, %p38
    %p41 = scmp.ne.s32.totalorder %s24, %s40
    %p42 = scmp.eq.s32.totalorder %s16, 0
    %p43 = por %p41, %p42
    %s45 = sadd.s32 %s44, 1
    %p48 = scmp.eq.s32.totalorder %s10, 1
    %p49 = scmp.ne.s32.totalorder %s44, %s46
    %p50 = scmp.eq.s32.totalorder %s10, 0
    %p51 = por %p49, %p50
    %p52 = scmp.ne.s32.totalorder %s44, %s46
    %p53 = scmp.eq.s32.totalorder %s15, 1
    %p54 = por %p52, %p53
    %p55 = scmp.ne.s32.totalorder %s46, %s47
    %p56 = scmp.eq.s32.totalorder %s15, 0
    %p57 = por %p55, %p56
    %p58 = scmp.ne.s32.totalorder %s46, %s47
    %p59 = scmp.eq.s32.totalorder %s16, 1
    %p60 = por %p58, %p59
    %p62 = scmp.ne.s32.totalorder %s47, %s61
    %p63 = scmp.eq.s32.totalorder %s16, 0
    %p64 = por %p62, %p63
    %s66 = sadd.s32 %s65, 1
    %p69 = scmp.eq.s32.totalorder %s10, 1
    %p70 = scmp.ne.s32.totalorder %s65, %s67
    %p71 = scmp.eq.s32.totalorder %s10, 0
    %p72 = por %p70, %p71
    %p73 = scmp.ne.s32.totalorder %s65, %s67
    %p74 = scmp.eq.s32.totalorder %s15, 1
    %p75 = por %p73, %p74
    %p76 = scmp.ne.s32.totalorder %s67, %s68
    %p77 = scmp.eq.s32.totalorder %s15, 0
    %p78 = por %p76, %p77
    %p79 = scmp.ne.s32.totalorder %s67, %s68
    %p80 = scmp.eq.s32.totalorder %s16, 1
    %p81 = por %p79, %p80
    %p83 = scmp.ne.s32.totalorder %s68, %s82
    %p84 = scmp.eq.s32.totalorder %s16, 0
    %p85 = por %p83, %p84
    %s87 = sadd.s32 %s86, 1
    %p90 = scmp.eq.s32.totalorder %s10, 1
    %p91 = scmp.ne.s32.totalorder %s86, %s88
    %p92 = scmp.eq.s32.totalorder %s10, 0
    %p93 = por %p91, %p92
    %p94 = scmp.ne.s32.totalorder %s86, %s88
    %p95 = scmp.eq.s32.totalorder %s15, 1
    %p96 = por %p94, %p95
    %p97 = scmp.ne.s32.totalorder %s88, %s89
    %p98 = scmp.eq.s32.totalorder %s15, 0
    %p99 = por %p97, %p98
    %p100 = scmp.ne.s32.totalorder %s88, %s89
    %p101 = scmp.eq.s32.totalorder %s16, 1
    %p102 = por %p100, %p101
    %p104 = scmp.ne.s32.totalorder %s89, %s103
    %p105 = scmp.eq.s32.totalorder %s16, 0
    %p106 = por %p104, %p105
    %s107 = ssub.s32 %s10, %s17
    %p108 = scmp.eq.s32.totalorder %s107, 0
    %s110 = sadd.s32 %s109, 1
    %s111 = scalar_select %p108, %s109, %s110
    %p114 = pneg %p108
    %p115 = scmp.eq.s32.totalorder %s10, 1
    %p116 = por %p114, %p115
    %p117 = scmp.ne.s32.totalorder %s109, %s112
    %p118 = scmp.eq.s32.totalorder %s10, 0
    %p119 = por %p117, %p118
    %p120 = scmp.ne.s32.totalorder %s109, %s112
    %p121 = scmp.eq.s32.totalorder %s15, 1
    %p122 = por %p120, %p121
    %p123 = scmp.ne.s32.totalorder %s112, %s113
    %p124 = scmp.eq.s32.totalorder %s15, 0
    %p125 = por %p123, %p124
    %p126 = scmp.ne.s32.totalorder %s112, %s113
    %p127 = scmp.eq.s32.totalorder %s16, 1
    %p128 = por %p126, %p127
    %p130 = scmp.ne.s32.totalorder %s113, %s129
    %p131 = scmp.eq.s32.totalorder %s16, 0
    %p132 = por %p130, %p131
    %p133 = scmp.le.s32.totalorder 1, %s10
    %p134 = scmp.lt.s32.totalorder %s10, 3
    %p135 = pnand %p133, %p134
    %p136 = pneg %p135
    // Predicated region
    $region9: #{_forward_impl.1} parent=5 // pred_check
      _
    $region10: #{_forward_impl.1} parent=5 // pred_check_branch
      %138 = sbr.rel (%p135) target = $region12
    $region11: #{_forward_impl.1} parent=5 // pred_region
      %s139 = ssub.s32 %s10, 1
      // Predicated region
      $region13: #{_forward_impl.1} parent=11 // pred_check
        %p140 = pneg %p57
      $region14: #{_forward_impl.1} parent=11 // pred_check_branch
        %142 = sbr.rel (%p140) target = $region16
      $region15: #{_forward_impl.1} parent=11 // pred_region
        _
      $region16: #{_forward_impl.1} parent=11 // pred_fallthru
        _
      // Predicated region
      $region17: #{_forward_impl.1} parent=11 // pred_check
        %p143 = pneg %p78
      $region18: #{_forward_impl.1} parent=11 // pred_check_branch
        %145 = sbr.rel (%p143) target = $region20
      $region19: #{_forward_impl.1} parent=11 // pred_region
        _
      $region20: #{_forward_impl.1} parent=11 // pred_fallthru
        _
      // Predicated region
      $region21: #{_forward_impl.1} parent=11 // pred_check
        %p146 = pneg %p99
      $region22: #{_forward_impl.1} parent=11 // pred_check_branch
        %148 = sbr.rel (%p146) target = $region24
      $region23: #{_forward_impl.1} parent=11 // pred_region
        _
      $region24: #{_forward_impl.1} parent=11 // pred_fallthru
        _
    $region12: #{_forward_impl.1} parent=5 // pred_fallthru
      _
    %p149 = scmp.lt.s32.totalorder %s10, 2
    // Predicated region
    $region25: #{_forward_impl.1} parent=5 // pred_check
      %p150 = pneg %p149
    $region26: #{_forward_impl.1} parent=5 // pred_check_branch
      %152 = sbr.rel (%p150) target = $region28
    $region27: #{_forward_impl.1} parent=5 // pred_region
      // Predicated region
      $region29: #{_forward_impl.1} parent=27 // pred_check
        %p153 = pneg %p30
      $region30: #{_forward_impl.1} parent=27 // pred_check_branch
        %155 = sbr.rel (%p153) target = $region32
      $region31: #{_forward_impl.1} parent=27 // pred_region
        %s156 = smul.u32 3, %s10
        %p157 = scmp.lt.s32.totalorder %s156, 5
        %s158 = scalar_select %p157, %s156, 5
        %s159 = smul.addr %s158, 8
        %s160 = scalar_lea.vmem %s0, %s159
        %s161 = smul.u32 3, %s10
      $region32: #{_forward_impl.1} parent=27 // pred_fallthru
        _
    $region28: #{_forward_impl.1} parent=5 // pred_fallthru
      _
    %p162 = scmp.le.s32.totalorder 1, %s10
    %p163 = scmp.lt.s32.totalorder %s10, 3
    %p164 = pnand %p162, %p163
    %p165 = pneg %p164
    // Predicated region
    $region33: #{_forward_impl.1} parent=5 // pred_check
      _
    $region34: #{_forward_impl.1} parent=5 // pred_check_branch
      %167 = sbr.rel (%p164) target = $region36
    $region35: #{_forward_impl.1} parent=5 // pred_region
      %s168 = ssub.s32 %s10, 1
      %s169 = smul.u32 3, %s15
      %p170 = scmp.lt.s32.totalorder %s169, 5
      %s171 = scalar_select %p170, %s169, 5
      %s172 = smul.addr %s171, 8
      %s173 = scalar_lea.vmem %s0, %s172
      %p174 = pneg %p36
      %p175 = pneg %p33
      %p176 = pneg %p57
      %p177 = pneg %p54
      %p178 = pneg %p78
      %p179 = pneg %p75
      %p180 = pneg %p99
      %p181 = pneg %p96
      %p182 = pneg %p125
      %p183 = pneg %p122
      %s184 = smul.u32 3, %s15
      %p185 = scmp.lt.s32.totalorder %s184, 5
      %s186 = scalar_select %p185, %s184, 5
      %s187 = smul.addr %s186, 4
      %s188 = smul.addr %s187, 8
      %s189 = scalar_lea.vmem %s4, %s188
      %s190 = smul.u32 3, %s15
      %p191 = scmp.lt.s32.totalorder %s190, 5
      %s192 = scalar_select %p191, %s190, 5
      %s193 = smul.addr %s192, 8
      %s194 = scalar_lea.vmem %s0, %s193
      %s195 = smul.u32 3, %s15
      %s196 = smul.u32 3, %s15
      %p197 = scmp.lt.s32.totalorder %s196, 5
      %s198 = scalar_select %p197, %s196, 5
      %s199 = smul.addr %s198, 4
      %s200 = smul.addr %s199, 8
      %s201 = scalar_lea.vmem %s4, %s200
      %s202 = smul.u32 3, %s15
      %v203 = vld [vmem:[%s194] sm:$0xff]
      %v204 = vld [vmem:[%s194 + $0x8] sm:$0xff]
      %v205 = vld [vmem:[%s194 + $0x10] sm:$0xff]
      %v206 = vld [vmem:[%s1] sm:$0xff]
      %v207 = vld [vmem:[%s1 + $0x8] sm:$0xff]
      %v208 = vld [vmem:[%s1 + $0x10] sm:$0xff]
      %v209 = vld [vmem:[%s1 + $0x18] sm:$0xff]
      %v210 = vld [vmem:[%s1 + $0x20] sm:$0xff]
      %v211 = vld [vmem:[%s1 + $0x28] sm:$0xff]
      %v212 = vld [vmem:[%s1 + $0x30] sm:$0xff]
      %v213 = vld [vmem:[%s1 + $0x38] sm:$0xff]
      %v214 = vld [vmem:[%s1 + $0x40] sm:$0xff]
      %v215 = vld [vmem:[%s1 + $0x48] sm:$0xff]
      %v216 = vld [vmem:[%s1 + $0x50] sm:$0xff]
      %v217 = vld [vmem:[%s1 + $0x58] sm:$0xff]
      %vm218 = vcmask 195584
      %v220 = vsel %vm218, %v203, 0
      %v223 = vsel %vm218, %v204, 0
      %v226 = vsel %vm218, %v205, 0
      %228 = vmatprep.subr.mxu0 %v207
      %229 = vmatpush1.msra.mxu0 %v206
      %230 = vmatprep.subr.mxu0 %v211
      %231 = vmatpush1.msra.mxu0 %v210
      %232 = vmatprep.subr.mxu0 %v215
      %233 = vmatpush1.msra.mxu0 %v214
      %234 = vmatprep.subr.mxu0 0.0
      %235 = vmatpush1.msra.mxu0 0.0
      %236 = vmatprep.subr.mxu0 0.0
      %237 = vmatpush1.msra.mxu0 0.0
      %238 = vmatprep.subr.mxu0 0.0
      %239 = vmatpush1.msra.mxu0 0.0
      %240 = vmatprep.subr.mxu0 0.0
      %241 = vmatpush1.msra.mxu0 0.0
      %242 = vmatprep.subr.mxu0 0.0
      %243 = vmatpush1.msra.mxu0 0.0
      %244 = vmatprep.subr.mxu0 0.0
      %245 = vmatpush1.msra.mxu0 0.0
      %246 = vmatprep.subr.mxu0 0.0
      %247 = vmatpush1.msra.mxu0 0.0
      %248 = vmatprep.subr.mxu0 0.0
      %249 = vmatpush1.msra.mxu0 0.0
      %250 = vmatprep.subr.mxu0 0.0
      %251 = vmatpush1.msra.mxu0 0.0
      %252 = vmatprep.subr.mxu0 0.0
      %253 = vmatpush1.msra.mxu0 0.0
      %254 = vmatprep.subr.mxu0 0.0
      %255 = vmatpush1.msra.mxu0 0.0
      %256 = vmatprep.subr.mxu0 0.0
      %257 = vmatpush1.msra.mxu0 0.0
      %258 = vmatprep.subr.mxu0 0.0
      %259 = vmatpush1.msra.mxu0 0.0
      %260 = vmatprep.subr.mxu0 0.0
      %261 = vmatpush1.msra.mxu0 0.0
      %262 = vmatprep.subr.mxu0 0.0
      %263 = vmatpush1.msra.mxu0 0.0
      %264 = vmatprep.subr.mxu0 0.0
      %265 = vmatpush1.msra.mxu0 0.0
      %266 = vmatprep.subr.mxu0 0.0
      %267 = vmatpush1.msra.mxu0 0.0
      %268 = vmatprep.subr.mxu0 0.0
      %269 = vmatpush1.msra.mxu0 0.0
      %270 = vmatprep.subr.mxu0 0.0
      %271 = vmatpush1.msra.mxu0 0.0
      %272 = vmatprep.subr.mxu0 0.0
      %273 = vmatpush1.msra.mxu0 0.0
      %274 = vmatprep.subr.mxu0 0.0
      %275 = vmatpush1.msra.mxu0 0.0
      %276 = vmatprep.subr.mxu0 0.0
      %277 = vmatpush1.msra.mxu0 0.0
      %278 = vmatprep.subr.mxu0 0.0
      %279 = vmatpush1.msra.mxu0 0.0
      %280 = vmatprep.subr.mxu0 0.0
      %281 = vmatpush1.msra.mxu0 0.0
      %282 = vmatprep.subr.mxu0 0.0
      %283 = vmatpush1.msra.mxu0 0.0
      %284 = vmatprep.subr.mxu0 0.0
      %285 = vmatpush1.msra.mxu0 0.0
      %286 = vmatprep.subr.mxu0 0.0
      %287 = vmatpush1.msra.mxu0 0.0
      %288 = vmatprep.subr.mxu0 0.0
      %289 = vmatpush1.msra.mxu0 0.0
      %290 = vmatprep.subr.mxu0 0.0
      %291 = vmatpush1.msra.mxu0 0.0
      %292 = vmatprep.mubr.f32.mxu0 0.0
      %293 = vmatmul.mubr.f32.gmra.mrb[0].mxu0 %v220
      %v294 = vpop.f32.mrb[0].mxu0
      %v295 = vadd.f32 0.0, %v294
      %v296 = vpop.f32.mrb[0].mxu0
      %v297 = vadd.f32 0.0, %v296
      %298 = vmatprep.mubr.f32.mxu0 0.0
      %299 = vmatmul.mubr.f32.gmra.mrb[0].mxu0 %v223
      %v300 = vpop.f32.mrb[0].mxu0
      %v301 = vadd.f32 0.0, %v300
      %v302 = vpop.f32.mrb[0].mxu0
      %v303 = vadd.f32 0.0, %v302
      %304 = vmatprep.mubr.f32.mxu0 0.0
      %305 = vmatmul.mubr.f32.gmra.mrb[0].mxu0 %v226
      %v306 = vpop.f32.mrb[0].mxu0
      %v307 = vadd.f32 0.0, %v306
      %v308 = vpop.f32.mrb[0].mxu0
      %v309 = vadd.f32 0.0, %v308
      %310 = vdwg.mxu0
      %311 = vmatprep.subr.mxu0 %v209
      %312 = vmatpush1.msra.mxu0 %v208
      %313 = vmatprep.subr.mxu0 %v213
      %314 = vmatpush1.msra.mxu0 %v212
      %315 = vmatprep.subr.mxu0 %v217
      %316 = vmatpush1.msra.mxu0 %v216
      %317 = vmatprep.subr.mxu0 0.0
      %318 = vmatpush1.msra.mxu0 0.0
      %319 = vmatprep.subr.mxu0 0.0
      %320 = vmatpush1.msra.mxu0 0.0
      %321 = vmatprep.subr.mxu0 0.0
      %322 = vmatpush1.msra.mxu0 0.0
      %323 = vmatprep.subr.mxu0 0.0
      %324 = vmatpush1.msra.mxu0 0.0
      %325 = vmatprep.subr.mxu0 0.0
      %326 = vmatpush1.msra.mxu0 0.0
      %327 = vmatprep.subr.mxu0 0.0
      %328 = vmatpush1.msra.mxu0 0.0
      %329 = vmatprep.subr.mxu0 0.0
      %330 = vmatpush1.msra.mxu0 0.0
      %331 = vmatprep.subr.mxu0 0.0
      %332 = vmatpush1.msra.mxu0 0.0
      %333 = vmatprep.subr.mxu0 0.0
      %334 = vmatpush1.msra.mxu0 0.0
      %335 = vmatprep.subr.mxu0 0.0
      %336 = vmatpush1.msra.mxu0 0.0
      %337 = vmatprep.subr.mxu0 0.0
      %338 = vmatpush1.msra.mxu0 0.0
      %339 = vmatprep.subr.mxu0 0.0
      %340 = vmatpush1.msra.mxu0 0.0
      %341 = vmatprep.subr.mxu0 0.0
      %342 = vmatpush1.msra.mxu0 0.0
      %343 = vmatprep.subr.mxu0 0.0
      %344 = vmatpush1.msra.mxu0 0.0
      %345 = vmatprep.subr.mxu0 0.0
      %346 = vmatpush1.msra.mxu0 0.0
      %347 = vmatprep.subr.mxu0 0.0
      %348 = vmatpush1.msra.mxu0 0.0
      %349 = vmatprep.subr.mxu0 0.0
      %350 = vmatpush1.msra.mxu0 0.0
      %351 = vmatprep.subr.mxu0 0.0
      %352 = vmatpush1.msra.mxu0 0.0
      %353 = vmatprep.subr.mxu0 0.0
      %354 = vmatpush1.msra.mxu0 0.0
      %355 = vmatprep.subr.mxu0 0.0
      %356 = vmatpush1.msra.mxu0 0.0
      %357 = vmatprep.subr.mxu0 0.0
      %358 = vmatpush1.msra.mxu0 0.0
      %359 = vmatprep.subr.mxu0 0.0
      %360 = vmatpush1.msra.mxu0 0.0
      %361 = vmatprep.subr.mxu0 0.0
      %362 = vmatpush1.msra.mxu0 0.0
      %363 = vmatprep.subr.mxu0 0.0
      %364 = vmatpush1.msra.mxu0 0.0
      %365 = vmatprep.subr.mxu0 0.0
      %366 = vmatpush1.msra.mxu0 0.0
      %367 = vmatprep.subr.mxu0 0.0
      %368 = vmatpush1.msra.mxu0 0.0
      %369 = vmatprep.subr.mxu0 0.0
      %370 = vmatpush1.msra.mxu0 0.0
      %371 = vmatprep.subr.mxu0 0.0
      %372 = vmatpush1.msra.mxu0 0.0
      %373 = vmatprep.subr.mxu0 0.0
      %374 = vmatpush1.msra.mxu0 0.0
      %375 = vmatprep.mubr.f32.mxu0 0.0
      %376 = vmatmul.mubr.f32.gmra.mrb[0].mxu0 %v220
      %v377 = vpop.f32.mrb[0].mxu0
      %v378 = vadd.f32 0.0, %v377
      %v379 = vpop.f32.mrb[0].mxu0
      %v380 = vadd.f32 0.0, %v379
      %381 = vmatprep.mubr.f32.mxu0 0.0
      %382 = vmatmul.mubr.f32.gmra.mrb[0].mxu0 %v223
      %v383 = vpop.f32.mrb[0].mxu0
      %v384 = vadd.f32 0.0, %v383
      %v385 = vpop.f32.mrb[0].mxu0
      %v386 = vadd.f32 0.0, %v385
      %387 = vmatprep.mubr.f32.mxu0 0.0
      %388 = vmatmul.mubr.f32.gmra.mrb[0].mxu0 %v226
      %v389 = vpop.f32.mrb[0].mxu0
      %v390 = vadd.f32 0.0, %v389
      %v391 = vpop.f32.mrb[0].mxu0
      %v392 = vadd.f32 0.0, %v391
      %393 = vdwg.mxu0
      %v394 = vld [vmem:[%s3] sm:$0x1]
      %v396 = vlaneseq
      %v397 = vshrl.u32 %v396, 7
      %v398 = vsub.s32 0, %v397
      %v399 = vrot.slane %v394, %v398
      %v401 = vadd.f32 %v295, %v399
      %v402 = vadd.f32 %v301, %v399
      %v403 = vadd.f32 %v307, %v399
      %404 = vst [vmem:[%s201] sm:$0xff] %v401
      %405 = vst [vmem:[%s201 + $0x20] sm:$0xff] %v402
      %406 = vst [vmem:[%s201 + $0x40] sm:$0xff] %v403
      %407 = vst [vmem:[%s201 + $0x8] sm:$0xff] %v297
      %408 = vst [vmem:[%s201 + $0x28] sm:$0xff] %v303
      %409 = vst [vmem:[%s201 + $0x48] sm:$0xff] %v309
      %v410 = vld [vmem:[%s2] sm:$0x1]
      %v412 = vlaneseq
      %v413 = vshrl.u32 %v412, 7
      %v414 = vsub.s32 0, %v413
      %v415 = vrot.slane %v410, %v414
      %v417 = vadd.f32 %v378, %v415
      %v418 = vadd.f32 %v384, %v415
      %v419 = vadd.f32 %v390, %v415
      %v420 = vadd.f32 %v417, %v380
      %v421 = vadd.f32 %v418, %v386
      %v422 = vadd.f32 %v419, %v392
      %423 = vst [vmem:[%s201 + $0x10] sm:$0xff] %v420
      %424 = vst [vmem:[%s201 + $0x30] sm:$0xff] %v421
      %425 = vst [vmem:[%s201 + $0x50] sm:$0xff] %v422
      %v426 = vsub.f32 %v417, %v380
      %v427 = vsub.f32 %v418, %v386
      %v428 = vsub.f32 %v419, %v392
      %429 = vst [vmem:[%s201 + $0x18] sm:$0xff] %v426
      %430 = vst [vmem:[%s201 + $0x38] sm:$0xff] %v427
      %431 = vst [vmem:[%s201 + $0x58] sm:$0xff] %v428
      %s432 = smul.u32 3, %s15
      %p433 = scmp.lt.s32.totalorder %s432, 5
      %s434 = scalar_select %p433, %s432, 5
      %s435 = smul.addr %s434, 4
      %s436 = smul.addr %s435, 8
      %s437 = scalar_lea.vmem %s4, %s436
      // Predicated region
      $region37: #{_forward_impl.1} parent=35 // pred_check
        %p438 = pneg %p122
      $region38: #{_forward_impl.1} parent=35 // pred_check_branch
        %440 = sbr.rel (%p438) target = $region40
      $region39: #{_forward_impl.1} parent=35 // pred_region
        %s441 = smul.u32 3, %s15
      $region40: #{_forward_impl.1} parent=35 // pred_fallthru
        _
    $region36: #{_forward_impl.1} parent=5 // pred_fallthru
      _
    %p442 = scmp.le.s32.totalorder 2, %s10
    // Predicated region
    $region41: #{_forward_impl.1} parent=5 // pred_check
      %p443 = pneg %p442
    $region42: #{_forward_impl.1} parent=5 // pred_check_branch
      %445 = sbr.rel (%p443) target = $region44
    $region43: #{_forward_impl.1} parent=5 // pred_region
      %s446 = ssub.s32 %s10, 2
      // Predicated region
      $region45: #{_forward_impl.1} parent=43 // pred_check
        %p447 = pneg %p128
      $region46: #{_forward_impl.1} parent=43 // pred_check_branch
        %449 = sbr.rel (%p447) target = $region48
      $region47: #{_forward_impl.1} parent=43 // pred_region
        %s450 = smul.u32 3, %s16
        %p451 = scmp.lt.s32.totalorder %s450, 5
        %s452 = scalar_select %p451, %s450, 5
        %s453 = smul.addr %s452, 4
        %s454 = smul.addr %s453, 8
        %s455 = scalar_lea.vmem %s4, %s454
      $region48: #{_forward_impl.1} parent=43 // pred_fallthru
        _
    $region44: #{_forward_impl.1} parent=5 // pred_fallthru
      _
  $region6: #{_forward_impl.1} parent=0 // loop_footer
    %s14 = sadd.s32 1, %s10
  $region7: #{_forward_impl.1} parent=0 // loop_footer_branch
    %9 = sbr.rel target = $region3
  $region8: #{_forward_impl.1} parent=0 // loop_exit
    _

// kernel: _forward_impl.1
$region0: #{_forward_impl.1}
  #allocation0 [shape = 'u32[]', space=smem, size = 0x4, offset = 0x4, fixed_abs, tag = 'smem constant byte address 0x4 - core index']
  #allocation1 [shape = 'u32[144,128]{1,0:T(1,128)}', space=vmem, size = 0x12000, scoped, tag = 'internal scratch']
  %s0 = inlined_call_operand.vmem [shape: f32[48,24], index: 0, kind: input, shape index: {}]
  %s1 = inlined_call_operand.vmem [shape: f32[24,512], index: 1, kind: input, shape index: {}]
  %s2 = inlined_call_operand.vmem [shape: f32[1,128], index: 2, kind: input, shape index: {}]
  %s3 = inlined_call_operand.vmem [shape: f32[1,128], index: 3, kind: input, shape index: {}]
  %s4 = inlined_call_operand.vmem [shape: f32[48,512], index: 4, kind: output, shape index: {}]
  %s5 = sld [smem:[#allocation0]]
  $region49: #{_forward_impl.1} parent=0
    _
  %s7 = ssub.s32 1, %s5
  %s8 = scalar_select 0, %s7, %s5
  loop: start=0, step=1, limit=4
  $region2: #{_forward_impl.1} parent=0 // loop_pre_header
    _
  $region3: #{_forward_impl.1} parent=0 // loop_header
    %s10 = sphi 0, %s14
    %p11 = scmp.ge.s32.totalorder %s10, 4
    %s20 = sphi 0, %s22
    %s23 = sphi 0, %s20
    %s24 = sphi 0, %s23
    %s40 = sphi 0, %s24
    %s44 = sphi 0, %s44
    %s46 = sphi 0, %s44
    %s47 = sphi 0, %s46
    %s61 = sphi 0, %s47
    %s65 = sphi 0, %s65
    %s67 = sphi 0, %s65
    %s68 = sphi 0, %s67
    %s82 = sphi 0, %s68
    %s86 = sphi 0, %s86
    %s88 = sphi 0, %s86
    %s89 = sphi 0, %s88
    %s103 = sphi 0, %s89
    %s109 = sphi 0, %s111
    %s112 = sphi 0, %s109
    %s113 = sphi 0, %s112
    %s129 = sphi 0, %s113
  $region4: #{_forward_impl.1} parent=0 // loop_header_branch
    %13 = sbr.rel (%p11) target = $region8
  $region5: #{_forward_impl.1} parent=0 // loop_body
    %s15 = ssub.s32 %s10, 1
    %s16 = ssub.s32 %s10, 2
    %s17 = sadd.s32 %s10, 1
    %s18 = ssub.s32 %s10, %s17
    %p19 = scmp.eq.s32.totalorder %s18, 0
    %s21 = sadd.s32 %s20, 1
    %s22 = scalar_select %p19, %s20, %s21
    %p25 = pneg %p19
    %p26 = scmp.eq.s32.totalorder %s10, 1
    %p27 = por %p25, %p26
    %p28 = scmp.ne.s32.totalorder %s20, %s23
    %p29 = scmp.eq.s32.totalorder %s10, 0
    %p30 = por %p28, %p29
    %p31 = scmp.ne.s32.totalorder %s20, %s23
    %p32 = scmp.eq.s32.totalorder %s15, 1
    %p33 = por %p31, %p32
    %p34 = scmp.ne.s32.totalorder %s23, %s24
    %p35 = scmp.eq.s32.totalorder %s15, 0
    %p36 = por %p34, %p35
    %p37 = scmp.ne.s32.totalorder %s23, %s24
    %p38 = scmp.eq.s32.totalorder %s16, 1
    %p39 = por %p37, %p38
    %p41 = scmp.ne.s32.totalorder %s24, %s40
    %p42 = scmp.eq.s32.totalorder %s16, 0
    %p43 = por %p41, %p42
    %s45 = sadd.s32 %s44, 1
    %p48 = scmp.eq.s32.totalorder %s10, 1
    %p49 = scmp.ne.s32.totalorder %s44, %s46
    %p50 = scmp.eq.s32.totalorder %s10, 0
    %p51 = por %p49, %p50
    %p52 = scmp.ne.s32.totalorder %s44, %s46
    %p53 = scmp.eq.s32.totalorder %s15, 1
    %p54 = por %p52, %p53
    %p55 = scmp.ne.s32.totalorder %s46, %s47
    %p56 = scmp.eq.s32.totalorder %s15, 0
    %p57 = por %p55, %p56
    %p58 = scmp.ne.s32.totalorder %s46, %s47
    %p59 = scmp.eq.s32.totalorder %s16, 1
    %p60 = por %p58, %p59
    %p62 = scmp.ne.s32.totalorder %s47, %s61
    %p63 = scmp.eq.s32.totalorder %s16, 0
    %p64 = por %p62, %p63
    %s66 = sadd.s32 %s65, 1
    %p69 = scmp.eq.s32.totalorder %s10, 1
    %p70 = scmp.ne.s32.totalorder %s65, %s67
    %p71 = scmp.eq.s32.totalorder %s10, 0
    %p72 = por %p70, %p71
    %p73 = scmp.ne.s32.totalorder %s65, %s67
    %p74 = scmp.eq.s32.totalorder %s15, 1
    %p75 = por %p73, %p74
    %p76 = scmp.ne.s32.totalorder %s67, %s68
    %p77 = scmp.eq.s32.totalorder %s15, 0
    %p78 = por %p76, %p77
    %p79 = scmp.ne.s32.totalorder %s67, %s68
    %p80 = scmp.eq.s32.totalorder %s16, 1
    %p81 = por %p79, %p80
    %p83 = scmp.ne.s32.totalorder %s68, %s82
    %p84 = scmp.eq.s32.totalorder %s16, 0
    %p85 = por %p83, %p84
    %s87 = sadd.s32 %s86, 1
    %p90 = scmp.eq.s32.totalorder %s10, 1
    %p91 = scmp.ne.s32.totalorder %s86, %s88
    %p92 = scmp.eq.s32.totalorder %s10, 0
    %p93 = por %p91, %p92
    %p94 = scmp.ne.s32.totalorder %s86, %s88
    %p95 = scmp.eq.s32.totalorder %s15, 1
    %p96 = por %p94, %p95
    %p97 = scmp.ne.s32.totalorder %s88, %s89
    %p98 = scmp.eq.s32.totalorder %s15, 0
    %p99 = por %p97, %p98
    %p100 = scmp.ne.s32.totalorder %s88, %s89
    %p101 = scmp.eq.s32.totalorder %s16, 1
    %p102 = por %p100, %p101
    %p104 = scmp.ne.s32.totalorder %s89, %s103
    %p105 = scmp.eq.s32.totalorder %s16, 0
    %p106 = por %p104, %p105
    %s107 = ssub.s32 %s10, %s17
    %p108 = scmp.eq.s32.totalorder %s107, 0
    %s110 = sadd.s32 %s109, 1
    %s111 = scalar_select %p108, %s109, %s110
    %p114 = pneg %p108
    %p115 = scmp.eq.s32.totalorder %s10, 1
    %p116 = por %p114, %p115
    %p117 = scmp.ne.s32.totalorder %s109, %s112
    %p118 = scmp.eq.s32.totalorder %s10, 0
    %p119 = por %p117, %p118
    %p120 = scmp.ne.s32.totalorder %s109, %s112
    %p121 = scmp.eq.s32.totalorder %s15, 1
    %p122 = por %p120, %p121
    %p123 = scmp.ne.s32.totalorder %s112, %s113
    %p124 = scmp.eq.s32.totalorder %s15, 0
    %p125 = por %p123, %p124
    %p126 = scmp.ne.s32.totalorder %s112, %s113
    %p127 = scmp.eq.s32.totalorder %s16, 1
    %p128 = por %p126, %p127
    %p130 = scmp.ne.s32.totalorder %s113, %s129
    %p131 = scmp.eq.s32.totalorder %s16, 0
    %p132 = por %p130, %p131
    %p133 = scmp.le.s32.totalorder 1, %s10
    %p134 = scmp.lt.s32.totalorder %s10, 3
    %p135 = pnand %p133, %p134
    %p136 = pneg %p135
    // Predicated region
    $region9: #{_forward_impl.1} parent=5 // pred_check
      _
    $region10: #{_forward_impl.1} parent=5 // pred_check_branch
      %138 = sbr.rel (%p135) target = $region12
    $region11: #{_forward_impl.1} parent=5 // pred_region
      %s139 = ssub.s32 %s10, 1
      // Predicated region
      $region13: #{_forward_impl.1} parent=11 // pred_check
        %p140 = pneg %p57
      $region14: #{_forward_impl.1} parent=11 // pred_check_branch
        %142 = sbr.rel (%p140) target = $region16
      $region15: #{_forward_impl.1} parent=11 // pred_region
        _
      $region16: #{_forward_impl.1} parent=11 // pred_fallthru
        _
      // Predicated region
      $region17: #{_forward_impl.1} parent=11 // pred_check
        %p143 = pneg %p78
      $region18: #{_forward_impl.1} parent=11 // pred_check_branch
        %145 = sbr.rel (%p143) target = $region20
      $region19: #{_forward_impl.1} parent=11 // pred_region
        _
      $region20: #{_forward_impl.1} parent=11 // pred_fallthru
        _
      // Predicated region
      $region21: #{_forward_impl.1} parent=11 // pred_check
        %p146 = pneg %p99
      $region22: #{_forward_impl.1} parent=11 // pred_check_branch
        %148 = sbr.rel (%p146) target = $region24
      $region23: #{_forward_impl.1} parent=11 // pred_region
        _
      $region24: #{_forward_impl.1} parent=11 // pred_fallthru
        _
    $region12: #{_forward_impl.1} parent=5 // pred_fallthru
      _
    %p149 = scmp.lt.s32.totalorder %s10, 2
    // Predicated region
    $region25: #{_forward_impl.1} parent=5 // pred_check
      %p150 = pneg %p149
    $region26: #{_forward_impl.1} parent=5 // pred_check_branch
      %152 = sbr.rel (%p150) target = $region28
    $region27: #{_forward_impl.1} parent=5 // pred_region
      // Predicated region
      $region29: #{_forward_impl.1} parent=27 // pred_check
        %p153 = pneg %p30
      $region30: #{_forward_impl.1} parent=27 // pred_check_branch
        %155 = sbr.rel (%p153) target = $region32
      $region31: #{_forward_impl.1} parent=27 // pred_region
        %s156 = smul.u32 3, %s10
        %p157 = scmp.lt.s32.totalorder %s156, 5
        %s158 = scalar_select %p157, %s156, 5
        %s159 = smul.addr %s158, 8
        %s160 = scalar_lea.vmem %s0, %s159
        %s161 = smul.u32 3, %s10
      $region32: #{_forward_impl.1} parent=27 // pred_fallthru
        _
    $region28: #{_forward_impl.1} parent=5 // pred_fallthru
      _
    %p162 = scmp.le.s32.totalorder 1, %s10
    %p163 = scmp.lt.s32.totalorder %s10, 3
    %p164 = pnand %p162, %p163
    %p165 = pneg %p164
    // Predicated region
    $region33: #{_forward_impl.1} parent=5 // pred_check
      _
    $region34: #{_forward_impl.1} parent=5 // pred_check_branch
      %167 = sbr.rel (%p164) target = $region36
    $region35: #{_forward_impl.1} parent=5 // pred_region
      %s168 = ssub.s32 %s10, 1
      %s169 = smul.u32 3, %s15
      %p170 = scmp.lt.s32.totalorder %s169, 5
      %s171 = scalar_select %p170, %s169, 5
      %s172 = smul.addr %s171, 8
      %s173 = scalar_lea.vmem %s0, %s172
      %p174 = pneg %p36
      %p175 = pneg %p33
      %p176 = pneg %p57
      %p177 = pneg %p54
      %p178 = pneg %p78
      %p179 = pneg %p75
      %p180 = pneg %p99
      %p181 = pneg %p96
      %p182 = pneg %p125
      %p183 = pneg %p122
      %s184 = smul.u32 3, %s15
      %p185 = scmp.lt.s32.totalorder %s184, 5
      %s186 = scalar_select %p185, %s184, 5
      %s187 = smul.addr %s186, 4
      %s188 = smul.addr %s187, 8
      %s189 = scalar_lea.vmem %s4, %s188
      %s190 = smul.u32 3, %s15
      %p191 = scmp.lt.s32.totalorder %s190, 5
      %s192 = scalar_select %p191, %s190, 5
      %s193 = smul.addr %s192, 8
      %s194 = scalar_lea.vmem %s0, %s193
      %s195 = smul.u32 3, %s15
      %s196 = smul.u32 3, %s15
      %p197 = scmp.lt.s32.totalorder %s196, 5
      %s198 = scalar_select %p197, %s196, 5
      %s199 = smul.addr %s198, 4
      %s200 = smul.addr %s199, 8
      %s201 = scalar_lea.vmem %s4, %s200
      %s202 = smul.u32 3, %s15
      %v203 = vld [vmem:[%s194] sm:$0xff]
      %v204 = vld [vmem:[%s194 + $0x8] sm:$0xff]
      %v205 = vld [vmem:[%s194 + $0x10] sm:$0xff]
      %v206 = vld [vmem:[%s1] sm:$0xff]
      %v207 = vld [vmem:[%s1 + $0x8] sm:$0xff]
      %v208 = vld [vmem:[%s1 + $0x10] sm:$0xff]
      %v209 = vld [vmem:[%s1 + $0x18] sm:$0xff]
      %v210 = vld [vmem:[%s1 + $0x20] sm:$0xff]
      %v211 = vld [vmem:[%s1 + $0x28] sm:$0xff]
      %v212 = vld [vmem:[%s1 + $0x30] sm:$0xff]
      %v213 = vld [vmem:[%s1 + $0x38] sm:$0xff]
      %v214 = vld [vmem:[%s1 + $0x40] sm:$0xff]
      %v215 = vld [vmem:[%s1 + $0x48] sm:$0xff]
      %v216 = vld [vmem:[%s1 + $0x50] sm:$0xff]
      %v217 = vld [vmem:[%s1 + $0x58] sm:$0xff]
      %vm218 = vcmask 195584
      %v220 = vsel %vm218, %v203, 0
      %v223 = vsel %vm218, %v204, 0
      %v226 = vsel %vm218, %v205, 0
      %228 = vmatprep.subr.mxu0 %v207
      %229 = vmatpush1.msra.mxu0 %v206
      %230 = vmatprep.subr.mxu0 %v211
      %231 = vmatpush1.msra.mxu0 %v210
      %232 = vmatprep.subr.mxu0 %v215
      %233 = vmatpush1.msra.mxu0 %v214
      %234 = vmatprep.subr.mxu0 0.0
      %235 = vmatpush1.msra.mxu0 0.0
      %236 = vmatprep.subr.mxu0 0.0
      %237 = vmatpush1.msra.mxu0 0.0
      %238 = vmatprep.subr.mxu0 0.0
      %239 = vmatpush1.msra.mxu0 0.0
      %240 = vmatprep.subr.mxu0 0.0
      %241 = vmatpush1.msra.mxu0 0.0
      %242 = vmatprep.subr.mxu0 0.0
      %243 = vmatpush1.msra.mxu0 0.0
      %244 = vmatprep.subr.mxu0 0.0
      %245 = vmatpush1.msra.mxu0 0.0
      %246 = vmatprep.subr.mxu0 0.0
      %247 = vmatpush1.msra.mxu0 0.0
      %248 = vmatprep.subr.mxu0 0.0
      %249 = vmatpush1.msra.mxu0 0.0
      %250 = vmatprep.subr.mxu0 0.0
      %251 = vmatpush1.msra.mxu0 0.0
      %252 = vmatprep.subr.mxu0 0.0
      %253 = vmatpush1.msra.mxu0 0.0
      %254 = vmatprep.subr.mxu0 0.0
      %255 = vmatpush1.msra.mxu0 0.0
      %256 = vmatprep.subr.mxu0 0.0
      %257 = vmatpush1.msra.mxu0 0.0
      %258 = vmatprep.subr.mxu0 0.0
      %259 = vmatpush1.msra.mxu0 0.0
      %260 = vmatprep.subr.mxu0 0.0
      %261 = vmatpush1.msra.mxu0 0.0
      %262 = vmatprep.subr.mxu0 0.0
      %263 = vmatpush1.msra.mxu0 0.0
      %264 = vmatprep.subr.mxu0 0.0
      %265 = vmatpush1.msra.mxu0 0.0
      %266 = vmatprep.subr.mxu0 0.0
      %267 = vmatpush1.msra.mxu0 0.0
      %268 = vmatprep.subr.mxu0 0.0
      %269 = vmatpush1.msra.mxu0 0.0
      %270 = vmatprep.subr.mxu0 0.0
      %271 = vmatpush1.msra.mxu0 0.0
      %272 = vmatprep.subr.mxu0 0.0
      %273 = vmatpush1.msra.mxu0 0.0
      %274 = vmatprep.subr.mxu0 0.0
      %275 = vmatpush1.msra.mxu0 0.0
      %276 = vmatprep.subr.mxu0 0.0
      %277 = vmatpush1.msra.mxu0 0.0
      %278 = vmatprep.subr.mxu0 0.0
      %279 = vmatpush1.msra.mxu0 0.0
      %280 = vmatprep.subr.mxu0 0.0
      %281 = vmatpush1.msra.mxu0 0.0
      %282 = vmatprep.subr.mxu0 0.0
      %283 = vmatpush1.msra.mxu0 0.0
      %284 = vmatprep.subr.mxu0 0.0
      %285 = vmatpush1.msra.mxu0 0.0
      %286 = vmatprep.subr.mxu0 0.0
      %287 = vmatpush1.msra.mxu0 0.0
      %288 = vmatprep.subr.mxu0 0.0
      %289 = vmatpush1.msra.mxu0 0.0
      %290 = vmatprep.subr.mxu0 0.0
      %291 = vmatpush1.msra.mxu0 0.0
      %292 = vmatprep.mubr.f32.mxu0 0.0
      %293 = vmatmul.mubr.f32.gmra.mrb[0].mxu0 %v220
      %v294 = vpop.f32.mrb[0].mxu0
      %v295 = vadd.f32 0.0, %v294
      %v296 = vpop.f32.mrb[0].mxu0
      %v297 = vadd.f32 0.0, %v296
      %298 = vmatprep.mubr.f32.mxu0 0.0
      %299 = vmatmul.mubr.f32.gmra.mrb[0].mxu0 %v223
      %v300 = vpop.f32.mrb[0].mxu0
      %v301 = vadd.f32 0.0, %v300
      %v302 = vpop.f32.mrb[0].mxu0
      %v303 = vadd.f32 0.0, %v302
      %304 = vmatprep.mubr.f32.mxu0 0.0
      %305 = vmatmul.mubr.f32.gmra.mrb[0].mxu0 %v226
      %v306 = vpop.f32.mrb[0].mxu0
      %v307 = vadd.f32 0.0, %v306
      %v308 = vpop.f32.mrb[0].mxu0
      %v309 = vadd.f32 0.0, %v308
      %310 = vdwg.mxu0
      %311 = vmatprep.subr.mxu0 %v209
      %312 = vmatpush1.msra.mxu0 %v208
      %313 = vmatprep.subr.mxu0 %v213
      %314 = vmatpush1.msra.mxu0 %v212
      %315 = vmatprep.subr.mxu0 %v217
      %316 = vmatpush1.msra.mxu0 %v216
      %317 = vmatprep.subr.mxu0 0.0
      %318 = vmatpush1.msra.mxu0 0.0
      %319 = vmatprep.subr.mxu0 0.0
      %320 = vmatpush1.msra.mxu0 0.0
      %321 = vmatprep.subr.mxu0 0.0
      %322 = vmatpush1.msra.mxu0 0.0
      %323 = vmatprep.subr.mxu0 0.0
      %324 = vmatpush1.msra.mxu0 0.0
      %325 = vmatprep.subr.mxu0 0.0
      %326 = vmatpush1.msra.mxu0 0.0
      %327 = vmatprep.subr.mxu0 0.0
      %328 = vmatpush1.msra.mxu0 0.0
      %329 = vmatprep.subr.mxu0 0.0
      %330 = vmatpush1.msra.mxu0 0.0
      %331 = vmatprep.subr.mxu0 0.0
      %332 = vmatpush1.msra.mxu0 0.0
      %333 = vmatprep.subr.mxu0 0.0
      %334 = vmatpush1.msra.mxu0 0.0
      %335 = vmatprep.subr.mxu0 0.0
      %336 = vmatpush1.msra.mxu0 0.0
      %337 = vmatprep.subr.mxu0 0.0
      %338 = vmatpush1.msra.mxu0 0.0
      %339 = vmatprep.subr.mxu0 0.0
      %340 = vmatpush1.msra.mxu0 0.0
      %341 = vmatprep.subr.mxu0 0.0
      %342 = vmatpush1.msra.mxu0 0.0
      %343 = vmatprep.subr.mxu0 0.0
      %344 = vmatpush1.msra.mxu0 0.0
      %345 = vmatprep.subr.mxu0 0.0
      %346 = vmatpush1.msra.mxu0 0.0
      %347 = vmatprep.subr.mxu0 0.0
      %348 = vmatpush1.msra.mxu0 0.0
      %349 = vmatprep.subr.mxu0 0.0
      %350 = vmatpush1.msra.mxu0 0.0
      %351 = vmatprep.subr.mxu0 0.0
      %352 = vmatpush1.msra.mxu0 0.0
      %353 = vmatprep.subr.mxu0 0.0
      %354 = vmatpush1.msra.mxu0 0.0
      %355 = vmatprep.subr.mxu0 0.0
      %356 = vmatpush1.msra.mxu0 0.0
      %357 = vmatprep.subr.mxu0 0.0
      %358 = vmatpush1.msra.mxu0 0.0
      %359 = vmatprep.subr.mxu0 0.0
      %360 = vmatpush1.msra.mxu0 0.0
      %361 = vmatprep.subr.mxu0 0.0
      %362 = vmatpush1.msra.mxu0 0.0
      %363 = vmatprep.subr.mxu0 0.0
      %364 = vmatpush1.msra.mxu0 0.0
      %365 = vmatprep.subr.mxu0 0.0
      %366 = vmatpush1.msra.mxu0 0.0
      %367 = vmatprep.subr.mxu0 0.0
      %368 = vmatpush1.msra.mxu0 0.0
      %369 = vmatprep.subr.mxu0 0.0
      %370 = vmatpush1.msra.mxu0 0.0
      %371 = vmatprep.subr.mxu0 0.0
      %372 = vmatpush1.msra.mxu0 0.0
      %373 = vmatprep.subr.mxu0 0.0
      %374 = vmatpush1.msra.mxu0 0.0
      %375 = vmatprep.mubr.f32.mxu0 0.0
      %376 = vmatmul.mubr.f32.gmra.mrb[0].mxu0 %v220
      %v377 = vpop.f32.mrb[0].mxu0
      %v378 = vadd.f32 0.0, %v377
      %v379 = vpop.f32.mrb[0].mxu0
      %v380 = vadd.f32 0.0, %v379
      %381 = vmatprep.mubr.f32.mxu0 0.0
      %382 = vmatmul.mubr.f32.gmra.mrb[0].mxu0 %v223
      %v383 = vpop.f32.mrb[0].mxu0
      %v384 = vadd.f32 0.0, %v383
      %v385 = vpop.f32.mrb[0].mxu0
      %v386 = vadd.f32 0.0, %v385
      %387 = vmatprep.mubr.f32.mxu0 0.0
      %388 = vmatmul.mubr.f32.gmra.mrb[0].mxu0 %v226
      %v389 = vpop.f32.mrb[0].mxu0
      %v390 = vadd.f32 0.0, %v389
      %v391 = vpop.f32.mrb[0].mxu0
      %v392 = vadd.f32 0.0, %v391
      %393 = vdwg.mxu0
      %v394 = vld [vmem:[%s3] sm:$0x1]
      %v396 = vlaneseq
      %v397 = vshrl.u32 %v396, 7
      %v398 = vsub.s32 0, %v397
      %v399 = vrot.slane %v394, %v398
      %v401 = vadd.f32 %v295, %v399
      %v402 = vadd.f32 %v301, %v399
      %v403 = vadd.f32 %v307, %v399
      %404 = vst [vmem:[%s201] sm:$0xff] %v401
      %405 = vst [vmem:[%s201 + $0x20] sm:$0xff] %v402
      %406 = vst [vmem:[%s201 + $0x40] sm:$0xff] %v403
      %407 = vst [vmem:[%s201 + $0x8] sm:$0xff] %v297
      %408 = vst [vmem:[%s201 + $0x28] sm:$0xff] %v303
      %409 = vst [vmem:[%s201 + $0x48] sm:$0xff] %v309
      %v410 = vld [vmem:[%s2] sm:$0x1]
      %v412 = vlaneseq
      %v413 = vshrl.u32 %v412, 7
      %v414 = vsub.s32 0, %v413
      %v415 = vrot.slane %v410, %v414
      %v417 = vadd.f32 %v378, %v415
      %v418 = vadd.f32 %v384, %v415
      %v419 = vadd.f32 %v390, %v415
      %v420 = vadd.f32 %v417, %v380
      %v421 = vadd.f32 %v418, %v386
      %v422 = vadd.f32 %v419, %v392
      %423 = vst [vmem:[%s201 + $0x10] sm:$0xff] %v420
      %424 = vst [vmem:[%s201 + $0x30] sm:$0xff] %v421
      %425 = vst [vmem:[%s201 + $0x50] sm:$0xff] %v422
      %v426 = vsub.f32 %v417, %v380
      %v427 = vsub.f32 %v418, %v386
      %v428 = vsub.f32 %v419, %v392
      %429 = vst [vmem:[%s201 + $0x18] sm:$0xff] %v426
      %430 = vst [vmem:[%s201 + $0x38] sm:$0xff] %v427
      %431 = vst [vmem:[%s201 + $0x58] sm:$0xff] %v428
      %s432 = smul.u32 3, %s15
      %p433 = scmp.lt.s32.totalorder %s432, 5
      %s434 = scalar_select %p433, %s432, 5
      %s435 = smul.addr %s434, 4
      %s436 = smul.addr %s435, 8
      %s437 = scalar_lea.vmem %s4, %s436
      // Predicated region
      $region37: #{_forward_impl.1} parent=35 // pred_check
        %p438 = pneg %p122
      $region38: #{_forward_impl.1} parent=35 // pred_check_branch
        %440 = sbr.rel (%p438) target = $region40
      $region39: #{_forward_impl.1} parent=35 // pred_region
        %s441 = smul.u32 3, %s15
      $region40: #{_forward_impl.1} parent=35 // pred_fallthru
        _
    $region36: #{_forward_impl.1} parent=5 // pred_fallthru
      _
    %p442 = scmp.le.s32.totalorder 2, %s10
    // Predicated region
    $region41: #{_forward_impl.1} parent=5 // pred_check
      %p443 = pneg %p442
    $region42: #{_forward_impl.1} parent=5 // pred_check_branch
      %445 = sbr.rel (%p443) target = $region44
    $region43: #{_forward_impl.1} parent=5 // pred_region
      %s446 = ssub.s32 %s10, 2
      // Predicated region
      $region45: #{_forward_impl.1} parent=43 // pred_check
        %p447 = pneg %p128
      $region46: #{_forward_impl.1} parent=43 // pred_check_branch
        %449 = sbr.rel (%p447) target = $region48
      $region47: #{_forward_impl.1} parent=43 // pred_region
        %s450 = smul.u32 3, %s16
        %p451 = scmp.lt.s32.totalorder %s450, 5
        %s452 = scalar_select %p451, %s450, 5
        %s453 = smul.addr %s452, 4
        %s454 = smul.addr %s453, 8
        %s455 = scalar_lea.vmem %s4, %s454
      $region48: #{_forward_impl.1} parent=43 // pred_fallthru
        _
    $region44: #{_forward_impl.1} parent=5 // pred_fallthru
      _
  $region6: #{_forward_impl.1} parent=0 // loop_footer
    %s14 = sadd.s32 1, %s10
  $region7: #{_forward_impl.1} parent=0 // loop_footer_branch
    %9 = sbr.rel target = $region3
  $region8: #{_forward_impl.1} parent=0 // loop_exit
    _

</llo_original>
